<compile_context>
chip_gen: v7x
topology: tpu7x:2x2x1
jax: 0.10.0
libtpu: 0.0.40
codegen_flags: <defaults>
</compile_context>

<pallas_src>
import functools

import jax
import jax.numpy as jnp
from jax.experimental import pallas as pl
from jax.experimental.pallas import tpu as pltpu


# --------------------------------------------------------------------------- #
# Kernel A: fused K/V projection, K written transposed.
# --------------------------------------------------------------------------- #
def _kv_proj_kernel(x_ref, wkv_ref, bkv_ref, kt_ref, v_ref):
    E = wkv_ref.shape[0]
    kv = jnp.dot(x_ref[...], wkv_ref[...],
                 preferred_element_type=jnp.float32) + bkv_ref[...]      # (ts, 2E) f32
    kt_ref[...] = kv[:, :E].T.astype(jnp.bfloat16)                       # (E, ts)
    v_ref[...] = kv[:, E:].astype(jnp.bfloat16)                          # (ts, E)


# --------------------------------------------------------------------------- #
# Kernel B: per-(batch, q-tile) attention + fused output projection.
# --------------------------------------------------------------------------- #
def _attn_kernel(x_ref, wq_ref, bq_ref, kt_ref, v_ref, wo_ref, bo_ref,
                 o_ref, qp_ref, hc_ref, *, num_heads, k_tile):
    E = wq_ref.shape[0]
    D = E // num_heads
    S = v_ref.shape[0]
    n_kv = S // k_tile
    tq = x_ref.shape[0]

    # Q projection for this query tile (1/sqrt(E) folded into wq/bq on the host).
    qp_ref[...] = (jnp.dot(x_ref[...], wq_ref[...],
                           preferred_element_type=jnp.float32)
                   + bq_ref[...]).astype(jnp.bfloat16)                   # (tq, E)

    for h in range(num_heads):                      # static, small head count
        qh = qp_ref[:, pl.ds(h * D, D)]                                  # (tq, D) bf16
        m = jnp.full((tq, 1), -jnp.inf, jnp.float32)
        l = jnp.zeros((tq, 1), jnp.float32)
        acc = jnp.zeros((tq, D), jnp.float32)

        for j in range(n_kv):                       # flash-style key tiling (static)
            kt_blk = kt_ref[pl.ds(h * D, D), pl.ds(j * k_tile, k_tile)]  # (D, kc) bf16
            v_blk = v_ref[pl.ds(j * k_tile, k_tile), pl.ds(h * D, D)]    # (kc, D) bf16

            s = jnp.dot(qh, kt_blk, preferred_element_type=jnp.float32)  # (tq, kc) f32
            m_new = jnp.maximum(m, jnp.max(s, axis=-1, keepdims=True))
            alpha = jnp.exp(m - m_new)
            p = jnp.exp(s - m_new)
            l = alpha * l + jnp.sum(p, axis=-1, keepdims=True)
            acc = alpha * acc + jnp.dot(p.astype(jnp.bfloat16), v_blk,
                                        preferred_element_type=jnp.float32)
            m = m_new

        inv_l = pl.reciprocal(l, approx=True)
        # head concat: write this head's output into its lane slice of the bf16 buffer
        hc_ref[:, pl.ds(h * D, D)] = (acc * inv_l).astype(jnp.bfloat16)

    # single fused output projection at full contraction depth K = E
    out = jnp.dot(hc_ref[...], wo_ref[...], preferred_element_type=jnp.float32)
    o_ref[...] = (out + bo_ref[...]).astype(o_ref.dtype)


# --------------------------------------------------------------------------- #
# Host wrapper.
# --------------------------------------------------------------------------- #
def _largest_divisor(n, cap, mult):
    """Largest d <= cap with n % d == 0 and d % mult == 0, else None."""
    for d in range(min(cap, n), 0, -1):
        if n % d == 0 and d % mult == 0:
            return d
    return None


def _vmem_limit_bytes():
    # Explicit scoped-VMEM limit with headroom below physical capacity
    # (64 MiB/TC on v7x, 128 MiB on v5e/v6e) instead of the 32 MiB default.
    try:
        cap = pltpu.get_tpu_info().vmem_capacity_bytes
    except Exception:
        cap = 64 * 1024 * 1024
    return min(int(cap) * 7 // 8, 100 * 1024 * 1024)


def multi_head_attention(x, params, *, num_heads, q_tile=None, k_tile=None,
                         out_dtype=jnp.float32):
    """Fused self-attention (is_cross=False, q = k = v = x) forward.

    x      : (B, S, E) float32 (cast to bf16 internally)
    params : PyTorch nn.Linear layout: wq/wk/wv/wo are (out, in) = (E, E),
             biases bq/bk/bv/bo are (1, E).
    """
    B, S, E = x.shape
    assert E % num_heads == 0

    if q_tile is None:
        q_tile = _largest_divisor(S, 128, 8) or S
    assert S % q_tile == 0
    if k_tile is None:
        k_tile = _largest_divisor(S, 512, 128) or S
    assert S % k_tile == 0
    n_q = S // q_tile
    n_s = S // k_tile                       # sequence chunks for the K/V projection

    # Host-side one-off prep: bf16 activations + weights, weights pre-transposed to
    # (in, out), K/V fused, score scale (1/sqrt(embed_dim)) folded into Q.
    scale = 1.0 / (E ** 0.5)
    x_bf = x.astype(jnp.bfloat16)
    wq_t = (params["wq"] * scale).T.astype(jnp.bfloat16)                 # (E, E)
    bq_s = (params["bq"] * scale).astype(jnp.float32)                    # (1, E)
    wkv_t = jnp.concatenate([params["wk"].T, params["wv"].T],
                            axis=1).astype(jnp.bfloat16)                 # (E, 2E)
    bkv = jnp.concatenate([params["bk"], params["bv"]],
                          axis=1).astype(jnp.float32)                    # (1, 2E)
    wo_t = params["wo"].T.astype(jnp.bfloat16)                           # (E, E)
    bo = params["bo"].astype(jnp.float32)                                # (1, E)

    vmem_limit = _vmem_limit_bytes()

    def const2(shape):
        # Constant-index weight/bias block: DMA'd once, single-buffered.
        return pl.BlockSpec(shape, lambda b, i: (0, 0),
                            pipeline_mode=pl.Buffered(buffer_count=1))

    # ---- Kernel A: K^T / V projection ------------------------------------ #
    kt, v = pl.pallas_call(
        _kv_proj_kernel,
        out_shape=(jax.ShapeDtypeStruct((B, E, S), jnp.bfloat16),
                   jax.ShapeDtypeStruct((B, S, E), jnp.bfloat16)),
        grid_spec=pltpu.PrefetchScalarGridSpec(
            num_scalar_prefetch=0,
            grid=(B, n_s),
            in_specs=[
                pl.BlockSpec((None, k_tile, E), lambda b, i: (b, i, 0)),   # x chunk
                const2((E, 2 * E)), const2((1, 2 * E)),                    # wkv_t, bkv
            ],
            out_specs=[
                pl.BlockSpec((None, E, k_tile), lambda b, i: (b, 0, i)),   # K^T chunk
                pl.BlockSpec((None, k_tile, E), lambda b, i: (b, i, 0)),   # V chunk
            ],
        ),
        compiler_params=pltpu.CompilerParams(
            dimension_semantics=("parallel", "parallel"),
            vmem_limit_bytes=vmem_limit),
    )(x_bf, wkv_t, bkv)

    # ---- Kernel B: attention + fused output projection -------------------- #
    kernel = functools.partial(_attn_kernel, num_heads=num_heads, k_tile=k_tile)
    out = pl.pallas_call(
        kernel,
        out_shape=jax.ShapeDtypeStruct((B, S, E), out_dtype),
        grid_spec=pltpu.PrefetchScalarGridSpec(
            num_scalar_prefetch=0,
            grid=(B, n_q),
            in_specs=[
                pl.BlockSpec((None, q_tile, E), lambda b, qi: (b, qi, 0)),  # x q-tile
                const2((E, E)), const2((1, E)),                             # wq_t, bq
                pl.BlockSpec((None, E, S), lambda b, qi: (b, 0, 0)),        # K^T (full)
                pl.BlockSpec((None, S, E), lambda b, qi: (b, 0, 0)),        # V   (full)
                const2((E, E)), const2((1, E)),                             # wo_t, bo
            ],
            out_specs=pl.BlockSpec((None, q_tile, E), lambda b, qi: (b, qi, 0)),
            scratch_shapes=[pltpu.VMEM((q_tile, E), jnp.bfloat16),          # Q proj
                            pltpu.VMEM((q_tile, E), jnp.bfloat16)],         # head concat
        ),
        compiler_params=pltpu.CompilerParams(
            dimension_semantics=("parallel", "parallel"),
            vmem_limit_bytes=vmem_limit),
    )(x_bf, wq_t, bq_s, kt, v, wo_t, bo)
    return out


# --------------------------------------------------------------------------- #
# Pure-JAX f32 reference reproducing the PyTorch forward (is_cross=False).
# --------------------------------------------------------------------------- #
def _reference_mha(q, k, v, params, *, num_heads):
    B, S, E = q.shape
    D = E // num_heads

    def lin(x, w, b):
        return x @ w.T + b

    qp = lin(q, params["wq"], params["bq"])
    kp = lin(k, params["wk"], params["bk"])
    vp = lin(v, params["wv"], params["bv"])

    def split(t):  # (B,S,E) -> (B,H,S,D)
        return t.reshape(B, S, num_heads, D).transpose(0, 2, 1, 3)

    qh, kh, vh = split(qp), split(kp), split(vp)
    scores = jax.nn.softmax(
        jnp.einsum("bhsd,bhtd->bhst", qh, kh) / (E ** 0.5), axis=-1)
    out = jnp.einsum("bhst,bhtd->bhsd", scores, vh)
    out = out.transpose(0, 2, 1, 3).reshape(B, S, E)
    return lin(out, params["wo"], params["bo"])


if __name__ == "__main__":
    # Small but layout-friendly shapes: D = 32 per head; k_tile=128 exercises the
    # multi-chunk flash loop (2 key chunks) and the 2x2 projection grid.
    B, S, E, H = 2, 256, 128, 4
    key = jax.random.PRNGKey(0)
    ks = jax.random.split(key, 9)

    def w_init(k):
        return (jax.random.uniform(k, (E, E), jnp.float32) - 0.5) * 0.2

    def b_init(k):
        return (jax.random.uniform(k, (1, E), jnp.float32) - 0.5) * 0.2

    params = {
        "wq": w_init(ks[0]), "bq": b_init(ks[1]),
        "wk": w_init(ks[2]), "bk": b_init(ks[3]),
        "wv": w_init(ks[4]), "bv": b_init(ks[5]),
        "wo": w_init(ks[6]), "bo": b_init(ks[7]),
    }
    x = jax.random.normal(ks[8], (B, S, E), jnp.float32)

    out = multi_head_attention(x, params, num_heads=H, k_tile=128)
    out = jax.block_until_ready(out)

    ref = _reference_mha(x, x, x, params, num_heads=H)
    assert out.shape == (B, S, E)
    max_err = float(jnp.max(jnp.abs(out - ref)))
    # bf16 MXU operands (f32 accumulation / f32 softmax) -> a few e-3 abs error expected.
    assert jnp.allclose(out, ref, atol=2e-2, rtol=2e-2), f"mismatch vs reference: {max_err}"

    print("KERNEL_OK")
</pallas_src>

<mosaic_0001>
module attributes {stable_mosaic.version = 11 : i64} {
  func.func @_kv_proj_kernel(%arg0: i32, %arg1: i32, %arg2: memref<1x128x128xbf16, #tpu.memory_space<vmem>>, %arg3: memref<128x256xbf16, #tpu.memory_space<vmem>>, %arg4: memref<1x256xf32, #tpu.memory_space<vmem>>, %arg5: memref<1x128x128xbf16, #tpu.memory_space<vmem>>, %arg6: memref<1x128x128xbf16, #tpu.memory_space<vmem>>) attributes {dimension_semantics = [#tpu.dimension_semantics<parallel>, #tpu.dimension_semantics<parallel>], iteration_bounds = array<i64: 2, 2>, scalar_prefetch = 0 : i64, scratch_operands = 0 : i64, tpu.core_type = #tpu.core_type<tc>, window_params = [{transform_indices = @transform_0, window_bounds = array<i64: 1, 128, 128>}, {pipeline_mode = #tpu.pipeline_mode<synchronous>, transform_indices = @transform_1, window_bounds = array<i64: 128, 256>}, {pipeline_mode = #tpu.pipeline_mode<synchronous>, transform_indices = @transform_2, window_bounds = array<i64: 1, 256>}, {transform_indices = @transform_3, window_bounds = array<i64: 1, 128, 128>}, {transform_indices = @transform_4, window_bounds = array<i64: 1, 128, 128>}]} {
    %c0 = arith.constant 0 : index
    %c0_0 = arith.constant 0 : index
    %c0_1 = arith.constant 0 : index
    %0 = vector.load %arg2[%c0, %c0_0, %c0_1] : memref<1x128x128xbf16, #tpu.memory_space<vmem>>, vector<1x128x128xbf16>
    %1 = vector.shape_cast %0 : vector<1x128x128xbf16> to vector<128x128xbf16>
    %c0_2 = arith.constant 0 : index
    %c0_3 = arith.constant 0 : index
    %2 = vector.load %arg3[%c0_2, %c0_3] : memref<128x256xbf16, #tpu.memory_space<vmem>>, vector<128x256xbf16>
    %cst = arith.constant dense<0.000000e+00> : vector<128x256xf32>
    %3 = tpu.matmul %1, %2, %cst {dimension_numbers = #tpu.dot_dimension_numbers<[1], [0], [0], [1], [0, 0, 1, 1], [], []>} : vector<128x128xbf16>, vector<128x256xbf16>, vector<128x256xf32> -> vector<128x256xf32>
    %c0_4 = arith.constant 0 : index
    %c0_5 = arith.constant 0 : index
    %4 = vector.load %arg4[%c0_4, %c0_5] : memref<1x256xf32, #tpu.memory_space<vmem>>, vector<1x256xf32>
    %5 = vector.broadcast %4 : vector<1x256xf32> to vector<128x256xf32>
    %6 = arith.addf %3, %5 : vector<128x256xf32>
    %7 = vector.extract_strided_slice %6 {offsets = [0, 0], sizes = [128, 128], strides = [1, 1]} : vector<128x256xf32> to vector<128x128xf32>
    %8 = tpu.transpose %7, [1, 0] : vector<128x128xf32> -> vector<128x128xf32>
    %9 = arith.truncf %8 : vector<128x128xf32> to vector<128x128xbf16>
    %c0_6 = arith.constant 0 : index
    %c0_7 = arith.constant 0 : index
    %c0_8 = arith.constant 0 : index
    %10 = vector.load %arg5[%c0_6, %c0_7, %c0_8] : memref<1x128x128xbf16, #tpu.memory_space<vmem>>, vector<1x128x128xbf16>
    %11 = vector.shape_cast %10 : vector<1x128x128xbf16> to vector<128x128xbf16>
    %12 = vector.shape_cast %9 : vector<128x128xbf16> to vector<1x128x128xbf16>
    tpu.vector_store %arg5[%c0_6, %c0_7, %c0_8], %12 {strides = array<i32>} : memref<1x128x128xbf16, #tpu.memory_space<vmem>>, vector<1x128x128xbf16>,
    %13 = vector.extract_strided_slice %6 {offsets = [0, 128], sizes = [128, 128], strides = [1, 1]} : vector<128x256xf32> to vector<128x128xf32>
    %14 = arith.truncf %13 : vector<128x128xf32> to vector<128x128xbf16>
    %c0_9 = arith.constant 0 : index
    %c0_10 = arith.constant 0 : index
    %c0_11 = arith.constant 0 : index
    %15 = vector.load %arg6[%c0_9, %c0_10, %c0_11] : memref<1x128x128xbf16, #tpu.memory_space<vmem>>, vector<1x128x128xbf16>
    %16 = vector.shape_cast %15 : vector<1x128x128xbf16> to vector<128x128xbf16>
    %17 = vector.shape_cast %14 : vector<128x128xbf16> to vector<1x128x128xbf16>
    tpu.vector_store %arg6[%c0_9, %c0_10, %c0_11], %17 {strides = array<i32>} : memref<1x128x128xbf16, #tpu.memory_space<vmem>>, vector<1x128x128xbf16>,
    return
  }
  func.func @transform_0(%arg0: i32, %arg1: i32) -> (i32, i32, i32) {
    %c0_i32 = arith.constant 0 : i32
    %c0_i32_0 = arith.constant 0 : i32
    return %arg0, %arg1, %c0_i32 : i32, i32, i32
  }
  func.func @transform_1(%arg0: i32, %arg1: i32) -> (i32, i32) {
    %c0_i32 = arith.constant 0 : i32
    %c0_i32_0 = arith.constant 0 : i32
    %c0_i32_1 = arith.constant 0 : i32
    return %c0_i32, %c0_i32_0 : i32, i32
  }
  func.func @transform_2(%arg0: i32, %arg1: i32) -> (i32, i32) {
    %c0_i32 = arith.constant 0 : i32
    %c0_i32_0 = arith.constant 0 : i32
    %c0_i32_1 = arith.constant 0 : i32
    return %c0_i32, %c0_i32_0 : i32, i32
  }
  func.func @transform_3(%arg0: i32, %arg1: i32) -> (i32, i32, i32) {
    %c0_i32 = arith.constant 0 : i32
    %c0_i32_0 = arith.constant 0 : i32
    return %arg0, %c0_i32, %arg1 : i32, i32, i32
  }
  func.func @transform_4(%arg0: i32, %arg1: i32) -> (i32, i32, i32) {
    %c0_i32 = arith.constant 0 : i32
    %c0_i32_0 = arith.constant 0 : i32
    return %arg0, %arg1, %c0_i32 : i32, i32, i32
  }
}

</mosaic_0001>

<llo_original>
// kernel: tpu_custom_call.1
$region0: #{tpu_custom_call.1}
  #allocation0 [shape = 'u32[]', space=smem, size = 0x4, offset = 0x4, fixed_abs, tag = 'smem constant byte address 0x4 - core index']
  #allocation1 [shape = 'u32[144,128]{1,0:T(1,128)}', space=vmem, size = 0x12000, scoped, tag = 'internal scratch']
  %s0 = inlined_call_operand.hbm [shape: bf16[2,256,128], index: 0, kind: input, shape index: {}]
  %s1 = inlined_call_operand.hbm [shape: bf16[128,256], index: 1, kind: input, shape index: {}]
  %s2 = inlined_call_operand.vmem [shape: f32[1,256], index: 2, kind: input, shape index: {}]
  %s3 = inlined_call_operand.hbm [shape: bf16[2,128,256], index: 3, kind: output, shape index: {0}]
  %s4 = inlined_call_operand.hbm [shape: bf16[2,256,128], index: 4, kind: output, shape index: {1}]
  %5 = xla_tuple %s3, %s4
  %s6 = sld [smem:[#allocation0]]
  $region61: #{tpu_custom_call.1} parent=0
    _
  %s8 = ssub.s32 1, %s6
  %s9 = scalar_select 0, %s8, %s6
  $region1: #{tpu_custom_call.1} parent=0
    #allocation2 [shape = 'u8[65536]{0}', space=vmem, size = 0x10000, scoped, tag = 'input window, operand 0']
    #allocation3 [shape = 's32[2]{0}', space=sflag, size = 0x8, scoped, tag = 'scoped memory for tpu_custom_call.1']
    #allocation4 [shape = 's32[2]{0}', space=sflag, size = 0x8, scoped, tag = 'scoped memory for tpu_custom_call.1']
    #allocation5 [shape = 'u8[65536]{0}', space=vmem, size = 0x10000, scoped, tag = 'input window, operand 1, single buffered']
    #allocation6 [shape = 's32[1]{0}', space=sflag, size = 0x4, scoped, tag = 'scoped memory for tpu_custom_call.1']
    #allocation7 [shape = 'u8[65536]{0}', space=vmem, size = 0x10000, scoped, tag = 'output window, operand 0']
    #allocation8 [shape = 'u8[65536]{0}', space=vmem, size = 0x10000, scoped, tag = 'output window, operand 1']
    #allocation9 [shape = 's32[2]{0}', space=sflag, size = 0x8, scoped, tag = 'scoped memory for tpu_custom_call.1']
    %10 = vsyncpa [#allocation3], 0
    %s11 = scalar_lea.sflag [#allocation3], 1
    %12 = vsyncpa %s11, 0
    %13 = vsyncpa [#allocation6], 0
    %14 = vsyncpa [#allocation4], 0
    %s15 = scalar_lea.sflag [#allocation4], 1
    %16 = vsyncpa %s15, 0
    %17 = vsyncpa [#allocation9], 0
    %s18 = scalar_lea.sflag [#allocation9], 1
    %19 = vsyncpa %s18, 0
    loop: start=0, step=1, limit=6
    $region2: #{tpu_custom_call.1} parent=1 // loop_pre_header
      _
    $region3: #{tpu_custom_call.1} parent=1 // loop_header
      %s21 = sphi 0, %s25
      %p22 = scmp.ge.s32.totalorder %s21, 6
      %s28 = sphi 0, %s40
      %s29 = sphi 0, %s36
      %s30 = sphi 0, %s28
      %s31 = sphi 0, %s29
      %s32 = sphi 0, %s30
      %s33 = sphi 0, %s31
      %s45 = sphi 0, %s47
      %s48 = sphi 0, %s45
      %s49 = sphi 0, %s48
      %s65 = sphi 0, %s49
      %s69 = sphi 0, %s69
      %s71 = sphi 0, %s69
      %s72 = sphi 0, %s71
      %s86 = sphi 0, %s72
      %s90 = sphi 0, %s90
      %s92 = sphi 0, %s90
      %s93 = sphi 0, %s92
      %s107 = sphi 0, %s93
      %s115 = sphi 0, %s117
      %s118 = sphi 0, %s115
      %s119 = sphi 0, %s118
      %s135 = sphi 0, %s119
      %s143 = sphi 0, %s145
      %s146 = sphi 0, %s143
      %s147 = sphi 0, %s146
      %s163 = sphi 0, %s147
    $region4: #{tpu_custom_call.1} parent=1 // loop_header_branch
      %24 = sbr.rel (%p22) target = $region8
    $region5: #{tpu_custom_call.1} parent=1 // loop_body
      %s26 = ssub.s32 %s21, 1
      %s27 = ssub.s32 %s21, 2
      %s34 = sadd.s32 1, %s29
      %p35 = scmp.ge.s32.totalorder %s34, 2
      %s36 = scalar_select %p35, 0, %s34
      %s37 = sadd.s32 1, %s28
      %s38 = scalar_select %p35, %s37, %s28
      %p39 = scmp.ge.s32.totalorder %s38, 2
      %s40 = scalar_select %p39, 0, %s38
      %s41 = ssub.s32 %s28, %s40
      %s42 = ssub.s32 %s29, %s36
      %s43 = sor.u32 %s41, %s42
      %p44 = scmp.eq.s32.totalorder %s43, 0
      %s46 = sadd.s32 %s45, 1
      %s47 = scalar_select %p44, %s45, %s46
      %p50 = pneg %p44
      %p51 = scmp.eq.s32.totalorder %s21, 3
      %p52 = por %p50, %p51
      %p53 = scmp.ne.s32.totalorder %s45, %s48
      %p54 = scmp.eq.s32.totalorder %s21, 0
      %p55 = por %p53, %p54
      %p56 = scmp.ne.s32.totalorder %s45, %s48
      %p57 = scmp.eq.s32.totalorder %s26, 3
      %p58 = por %p56, %p57
      %p59 = scmp.ne.s32.totalorder %s48, %s49
      %p60 = scmp.eq.s32.totalorder %s26, 0
      %p61 = por %p59, %p60
      %p62 = scmp.ne.s32.totalorder %s48, %s49
      %p63 = scmp.eq.s32.totalorder %s27, 3
      %p64 = por %p62, %p63
      %p66 = scmp.ne.s32.totalorder %s49, %s65
      %p67 = scmp.eq.s32.totalorder %s27, 0
      %p68 = por %p66, %p67
      %s70 = sadd.s32 %s69, 1
      %p73 = scmp.eq.s32.totalorder %s21, 3
      %p74 = scmp.ne.s32.totalorder %s69, %s71
      %p75 = scmp.eq.s32.totalorder %s21, 0
      %p76 = por %p74, %p75
      %p77 = scmp.ne.s32.totalorder %s69, %s71
      %p78 = scmp.eq.s32.totalorder %s26, 3
      %p79 = por %p77, %p78
      %p80 = scmp.ne.s32.totalorder %s71, %s72
      %p81 = scmp.eq.s32.totalorder %s26, 0
      %p82 = por %p80, %p81
      %p83 = scmp.ne.s32.totalorder %s71, %s72
      %p84 = scmp.eq.s32.totalorder %s27, 3
      %p85 = por %p83, %p84
      %p87 = scmp.ne.s32.totalorder %s72, %s86
      %p88 = scmp.eq.s32.totalorder %s27, 0
      %p89 = por %p87, %p88
      %s91 = sadd.s32 %s90, 1
      %p94 = scmp.eq.s32.totalorder %s21, 3
      %p95 = scmp.ne.s32.totalorder %s90, %s92
      %p96 = scmp.eq.s32.totalorder %s21, 0
      %p97 = por %p95, %p96
      %p98 = scmp.ne.s32.totalorder %s90, %s92
      %p99 = scmp.eq.s32.totalorder %s26, 3
      %p100 = por %p98, %p99
      %p101 = scmp.ne.s32.totalorder %s92, %s93
      %p102 = scmp.eq.s32.totalorder %s26, 0
      %p103 = por %p101, %p102
      %p104 = scmp.ne.s32.totalorder %s92, %s93
      %p105 = scmp.eq.s32.totalorder %s27, 3
      %p106 = por %p104, %p105
      %p108 = scmp.ne.s32.totalorder %s93, %s107
      %p109 = scmp.eq.s32.totalorder %s27, 0
      %p110 = por %p108, %p109
      %s111 = ssub.s32 %s28, %s40
      %s112 = ssub.s32 %s29, %s36
      %s113 = sor.u32 %s111, %s112
      %p114 = scmp.eq.s32.totalorder %s113, 0
      %s116 = sadd.s32 %s115, 1
      %s117 = scalar_select %p114, %s115, %s116
      %p120 = pneg %p114
      %p121 = scmp.eq.s32.totalorder %s21, 3
      %p122 = por %p120, %p121
      %p123 = scmp.ne.s32.totalorder %s115, %s118
      %p124 = scmp.eq.s32.totalorder %s21, 0
      %p125 = por %p123, %p124
      %p126 = scmp.ne.s32.totalorder %s115, %s118
      %p127 = scmp.eq.s32.totalorder %s26, 3
      %p128 = por %p126, %p127
      %p129 = scmp.ne.s32.totalorder %s118, %s119
      %p130 = scmp.eq.s32.totalorder %s26, 0
      %p131 = por %p129, %p130
      %p132 = scmp.ne.s32.totalorder %s118, %s119
      %p133 = scmp.eq.s32.totalorder %s27, 3
      %p134 = por %p132, %p133
      %p136 = scmp.ne.s32.totalorder %s119, %s135
      %p137 = scmp.eq.s32.totalorder %s27, 0
      %p138 = por %p136, %p137
      %s139 = ssub.s32 %s28, %s40
      %s140 = ssub.s32 %s29, %s36
      %s141 = sor.u32 %s139, %s140
      %p142 = scmp.eq.s32.totalorder %s141, 0
      %s144 = sadd.s32 %s143, 1
      %s145 = scalar_select %p142, %s143, %s144
      %p148 = pneg %p142
      %p149 = scmp.eq.s32.totalorder %s21, 3
      %p150 = por %p148, %p149
      %p151 = scmp.ne.s32.totalorder %s143, %s146
      %p152 = scmp.eq.s32.totalorder %s21, 0
      %p153 = por %p151, %p152
      %p154 = scmp.ne.s32.totalorder %s143, %s146
      %p155 = scmp.eq.s32.totalorder %s26, 3
      %p156 = por %p154, %p155
      %p157 = scmp.ne.s32.totalorder %s146, %s147
      %p158 = scmp.eq.s32.totalorder %s26, 0
      %p159 = por %p157, %p158
      %p160 = scmp.ne.s32.totalorder %s146, %s147
      %p161 = scmp.eq.s32.totalorder %s27, 3
      %p162 = por %p160, %p161
      %p164 = scmp.ne.s32.totalorder %s147, %s163
      %p165 = scmp.eq.s32.totalorder %s27, 0
      %p166 = por %p164, %p165
      %p167 = scmp.le.s32.totalorder 1, %s21
      %p168 = scmp.lt.s32.totalorder %s21, 5
      %p169 = pnand %p167, %p168
      %p170 = pneg %p169
      // Predicated region
      $region9: #{tpu_custom_call.1} parent=5 // pred_check
        _
      $region10: #{tpu_custom_call.1} parent=5 // pred_check_branch
        %172 = sbr.rel (%p169) target = $region12
      $region11: #{tpu_custom_call.1} parent=5 // pred_region
        %s173 = ssub.s32 %s21, 1
        // Predicated region
        $region13: #{tpu_custom_call.1} parent=11 // pred_check
          %p174 = pneg %p82
        $region14: #{tpu_custom_call.1} parent=11 // pred_check_branch
          %176 = sbr.rel (%p174) target = $region16
        $region15: #{tpu_custom_call.1} parent=11 // pred_region
          %s178 = ssub.s32 2048, 2048
          %179 = vsyncadd [#allocation6], %s178
          %s180 = sshll.u32 [#allocation5], 4
          %s181 = int_to_ptr.vmem [resolvable:$true] %s180
          %186 = dma.hbm_to_vmem [thread:$0]  %s1, 2048, %s181, [#allocation6], 128, 128, 8
        $region16: #{tpu_custom_call.1} parent=11 // pred_fallthru
          _
        // Predicated region
        $region17: #{tpu_custom_call.1} parent=11 // pred_check
          %p187 = pneg %p103
        $region18: #{tpu_custom_call.1} parent=11 // pred_check_branch
          %189 = sbr.rel (%p187) target = $region20
        $region19: #{tpu_custom_call.1} parent=11 // pred_region
          _
        $region20: #{tpu_custom_call.1} parent=11 // pred_fallthru
          _
      $region12: #{tpu_custom_call.1} parent=5 // pred_fallthru
        _
      %p190 = scmp.lt.s32.totalorder %s21, 4
      // Predicated region
      $region21: #{tpu_custom_call.1} parent=5 // pred_check
        %p191 = pneg %p190
      $region22: #{tpu_custom_call.1} parent=5 // pred_check_branch
        %193 = sbr.rel (%p191) target = $region24
      $region23: #{tpu_custom_call.1} parent=5 // pred_region
        // Predicated region
        $region25: #{tpu_custom_call.1} parent=23 // pred_check
          %p194 = pneg %p55
        $region26: #{tpu_custom_call.1} parent=23 // pred_check_branch
          %196 = sbr.rel (%p194) target = $region28
        $region27: #{tpu_custom_call.1} parent=23 // pred_region
          %s197 = sand.u32 %s45, 1
          %s198 = scalar_lea.sflag [#allocation3], %s197
          %s199 = sand.u32 %s45, 1
          %s200 = smul.addr %s199, 64
          %s201 = scalar_lea.vmem [#allocation2], %s200
          %s202 = smul.u32 16, %s29
          %s204 = ssub.s32 1024, 1024
          %205 = vsyncadd %s198, %s204
          %s206 = smul.addr %s28, 32
          %s207 = sadd.s32 %s202, %s206
          %s208 = smul.addr %s207, 64
          %s209 = scalar_lea.hbm %s0, %s208
          %s210 = sshll.u32 %s201, 4
          %s211 = int_to_ptr.vmem [resolvable:$true] %s210
          %216 = dma.hbm_to_vmem [thread:$0]  %s209, 1024, %s211, %s198, 64, 64, 4
        $region28: #{tpu_custom_call.1} parent=23 // pred_fallthru
          _
      $region24: #{tpu_custom_call.1} parent=5 // pred_fallthru
        _
      %p217 = scmp.le.s32.totalorder 1, %s21
      %p218 = scmp.lt.s32.totalorder %s21, 5
      %p219 = pnand %p217, %p218
      %p220 = pneg %p219
      // Predicated region
      $region29: #{tpu_custom_call.1} parent=5 // pred_check
        _
      $region30: #{tpu_custom_call.1} parent=5 // pred_check_branch
        %222 = sbr.rel (%p219) target = $region32
      $region31: #{tpu_custom_call.1} parent=5 // pred_region
        %s223 = ssub.s32 %s21, 1
        %s224 = sand.u32 %s48, 1
        %s225 = scalar_lea.sflag [#allocation3], %s224
        %s226 = sand.u32 %s48, 1
        %s227 = smul.addr %s226, 64
        %s228 = scalar_lea.vmem [#allocation2], %s227
        // Predicated region
        $region33: #{tpu_custom_call.1} parent=31 // pred_check
          %p229 = pneg %p61
        $region34: #{tpu_custom_call.1} parent=31 // pred_check_branch
          %231 = sbr.rel (%p229) target = $region36
        $region35: #{tpu_custom_call.1} parent=31 // pred_region
          %232 = dma.done %s225, 1024
        $region36: #{tpu_custom_call.1} parent=31 // pred_fallthru
          _
        // Predicated region
        $region37: #{tpu_custom_call.1} parent=31 // pred_check
          %p233 = pneg %p82
        $region38: #{tpu_custom_call.1} parent=31 // pred_check_branch
          %235 = sbr.rel (%p233) target = $region40
        $region39: #{tpu_custom_call.1} parent=31 // pred_region
          %236 = dma.done [#allocation6], 2048
        $region40: #{tpu_custom_call.1} parent=31 // pred_fallthru
          _
        %s237 = sand.u32 %s48, 1
        %s238 = scalar_lea.sflag [#allocation3], %s237
        %s239 = sand.u32 %s48, 1
        %s240 = smul.addr %s239, 64
        %s241 = scalar_lea.vmem [#allocation2], %s240
        %p242 = pneg %p61
        %p243 = pneg %p58
        %p244 = pneg %p82
        %p245 = pneg %p79
        %p246 = pneg %p103
        %p247 = pneg %p100
        %p248 = pneg %p131
        %p249 = pneg %p128
        %s250 = sand.u32 %s118, 1
        %s251 = scalar_lea.sflag [#allocation4], %s250
        %s252 = sand.u32 %s118, 1
        %s253 = smul.addr %s252, 64
        %s254 = scalar_lea.vmem [#allocation7], %s253
        %p255 = pneg %p159
        %p256 = pneg %p156
        %s257 = sand.u32 %s146, 1
        %s258 = scalar_lea.sflag [#allocation9], %s257
        %s259 = sand.u32 %s146, 1
        %s260 = smul.addr %s259, 64
        %s261 = scalar_lea.vmem [#allocation8], %s260
        %s262 = smul.u32 16, %s31
        %s263 = smul.u32 16, %s31
        %v265 = vld [vmem:[%s228] sm:$0xf]
        %v266 = vld [vmem:[%s228 + $0x4] sm:$0xf]
        %v267 = vld [vmem:[%s228 + $0x8] sm:$0xf]
        %v268 = vld [vmem:[%s228 + $0xc] sm:$0xf]
        %v269 = vld [vmem:[%s228 + $0x10] sm:$0xf]
        %v270 = vld [vmem:[%s228 + $0x14] sm:$0xf]
        %v271 = vld [vmem:[%s228 + $0x18] sm:$0xf]
        %v272 = vld [vmem:[%s228 + $0x1c] sm:$0xf]
        %v273 = vld [vmem:[%s228 + $0x20] sm:$0xf]
        %v274 = vld [vmem:[%s228 + $0x24] sm:$0xf]
        %v275 = vld [vmem:[%s228 + $0x28] sm:$0xf]
        %v276 = vld [vmem:[%s228 + $0x2c] sm:$0xf]
        %v277 = vld [vmem:[%s228 + $0x30] sm:$0xf]
        %v278 = vld [vmem:[%s228 + $0x34] sm:$0xf]
        %v279 = vld [vmem:[%s228 + $0x38] sm:$0xf]
        %v280 = vld [vmem:[%s228 + $0x3c] sm:$0xf]
        %v281 = vld [vmem:[#allocation5] sm:$0xff]
        %v282 = vld [vmem:[#allocation5 + $0x8] sm:$0xff]
        %v283 = vld [vmem:[#allocation5 + $0x10] sm:$0xff]
        %v284 = vld [vmem:[#allocation5 + $0x18] sm:$0xff]
        %v285 = vld [vmem:[#allocation5 + $0x20] sm:$0xff]
        %v286 = vld [vmem:[#allocation5 + $0x28] sm:$0xff]
        %v287 = vld [vmem:[#allocation5 + $0x30] sm:$0xff]
        %v288 = vld [vmem:[#allocation5 + $0x38] sm:$0xff]
        %v289 = vld [vmem:[#allocation5 + $0x40] sm:$0xff]
        %v290 = vld [vmem:[#allocation5 + $0x48] sm:$0xff]
        %v291 = vld [vmem:[#allocation5 + $0x50] sm:$0xff]
        %v292 = vld [vmem:[#allocation5 + $0x58] sm:$0xff]
        %v293 = vld [vmem:[#allocation5 + $0x60] sm:$0xff]
        %v294 = vld [vmem:[#allocation5 + $0x68] sm:$0xff]
        %v295 = vld [vmem:[#allocation5 + $0x70] sm:$0xff]
        %v296 = vld [vmem:[#allocation5 + $0x78] sm:$0xff]
        %v297 = vld [vmem:[%s2] sm:$0x3]
        %v299 = vlaneseq
        %v300 = vshrl.u32 %v299, 7
        %v301 = vsub.s32 0, %v300
        %v302 = vrot.slane %v297, %v301
        %v303 = vlaneseq
        %v304 = vshrl.u32 %v303, 7
        %v305 = vsub.s32 1, %v304
        %v306 = vrot.slane %v297, %v305
        %v325 = vunpack.c.l.b16 %v265
        %v326 = vunpack.c.l.b16 %v266
        %v327 = vunpack.c.l.b16 %v267
        %v328 = vunpack.c.l.b16 %v268
        %v329 = vunpack.c.l.b16 %v269
        %v330 = vunpack.c.l.b16 %v270
        %v331 = vunpack.c.l.b16 %v271
        %v332 = vunpack.c.l.b16 %v272
        %v333 = vunpack.c.l.b16 %v273
        %v334 = vunpack.c.l.b16 %v274
        %v335 = vunpack.c.l.b16 %v275
        %v336 = vunpack.c.l.b16 %v276
        %v337 = vunpack.c.l.b16 %v277
        %v338 = vunpack.c.l.b16 %v278
        %v339 = vunpack.c.l.b16 %v279
        %v340 = vunpack.c.l.b16 %v280
        %v341 = vpack.c.b16 %v326, %v325
        %v342 = vpack.c.b16 %v328, %v327
        %v343 = vpack.c.b16 %v330, %v329
        %v344 = vpack.c.b16 %v332, %v331
        %v345 = vpack.c.b16 %v334, %v333
        %v346 = vpack.c.b16 %v336, %v335
        %v347 = vpack.c.b16 %v338, %v337
        %v348 = vpack.c.b16 %v340, %v339
        %v373 = vunpack.c.l.b16 %v281
        %v374 = vunpack.c.h.b16 %v281
        %v375 = vunpack.c.l.b16 %v282
        %v376 = vunpack.c.h.b16 %v282
        %v377 = vunpack.c.l.b16 %v283
        %v378 = vunpack.c.h.b16 %v283
        %v379 = vunpack.c.l.b16 %v284
        %v380 = vunpack.c.h.b16 %v284
        %v381 = vunpack.c.l.b16 %v285
        %v382 = vunpack.c.h.b16 %v285
        %v383 = vunpack.c.l.b16 %v286
        %v384 = vunpack.c.h.b16 %v286
        %v385 = vunpack.c.l.b16 %v287
        %v386 = vunpack.c.h.b16 %v287
        %v387 = vunpack.c.l.b16 %v288
        %v388 = vunpack.c.h.b16 %v288
        %v389 = vunpack.c.l.b16 %v289
        %v390 = vunpack.c.h.b16 %v289
        %v391 = vunpack.c.l.b16 %v290
        %v392 = vunpack.c.h.b16 %v290
        %v393 = vunpack.c.l.b16 %v291
        %v394 = vunpack.c.h.b16 %v291
        %v395 = vunpack.c.l.b16 %v292
        %v396 = vunpack.c.h.b16 %v292
        %v397 = vunpack.c.l.b16 %v293
        %v398 = vunpack.c.h.b16 %v293
        %v399 = vunpack.c.l.b16 %v294
        %v400 = vunpack.c.h.b16 %v294
        %v401 = vunpack.c.l.b16 %v295
        %v402 = vunpack.c.h.b16 %v295
        %v403 = vunpack.c.l.b16 %v296
        %v404 = vunpack.c.h.b16 %v296
        %v405 = vpack.c.b16 %v375, %v373
        %v406 = vpack.c.b16 %v376, %v374
        %v407 = vpack.c.b16 %v379, %v377
        %v408 = vpack.c.b16 %v380, %v378
        %v409 = vpack.c.b16 %v383, %v381
        %v410 = vpack.c.b16 %v384, %v382
        %v411 = vpack.c.b16 %v387, %v385
        %v412 = vpack.c.b16 %v388, %v386
        %v413 = vpack.c.b16 %v391, %v389
        %v414 = vpack.c.b16 %v392, %v390
        %v415 = vpack.c.b16 %v395, %v393
        %v416 = vpack.c.b16 %v396, %v394
        %v417 = vpack.c.b16 %v399, %v397
        %v418 = vpack.c.b16 %v400, %v398
        %v419 = vpack.c.b16 %v403, %v401
        %v420 = vpack.c.b16 %v404, %v402
        %437 = vmatprep.subr.bf16.mxu0 %v406
        %438 = vmatpush1.bf16.msra.mxu0 %v405
        %439 = vmatprep.subr.bf16.mxu0 %v408
        %440 = vmatpush1.bf16.msra.mxu0 %v407
        %441 = vmatprep.subr.bf16.mxu0 %v410
        %442 = vmatpush1.bf16.msra.mxu0 %v409
        %443 = vmatprep.subr.bf16.mxu0 %v412
        %444 = vmatpush1.bf16.msra.mxu0 %v411
        %445 = vmatprep.subr.bf16.mxu0 %v414
        %446 = vmatpush1.bf16.msra.mxu0 %v413
        %447 = vmatprep.subr.bf16.mxu0 %v416
        %448 = vmatpush1.bf16.msra.mxu0 %v415
        %449 = vmatprep.subr.bf16.mxu0 %v418
        %450 = vmatpush1.bf16.msra.mxu0 %v417
        %451 = vmatprep.subr.bf16.mxu0 %v420
        %452 = vmatpush1.bf16.msra.mxu0 %v419
        %453 = vmatprep.subr.bf16.mxu0 0
        %454 = vmatpush1.bf16.msra.mxu0 0
        %455 = vmatprep.subr.bf16.mxu0 0
        %456 = vmatpush1.bf16.msra.mxu0 0
        %457 = vmatprep.subr.bf16.mxu0 0
        %458 = vmatpush1.bf16.msra.mxu0 0
        %459 = vmatprep.subr.bf16.mxu0 0
        %460 = vmatpush1.bf16.msra.mxu0 0
        %461 = vmatprep.subr.bf16.mxu0 0
        %462 = vmatpush1.bf16.msra.mxu0 0
        %463 = vmatprep.subr.bf16.mxu0 0
        %464 = vmatpush1.bf16.msra.mxu0 0
        %465 = vmatprep.subr.bf16.mxu0 0
        %466 = vmatpush1.bf16.msra.mxu0 0
        %467 = vmatprep.subr.bf16.mxu0 0
        %468 = vmatpush1.bf16.msra.mxu0 0
        %469 = vmatprep.mubr.bf16.mxu0 0
        %470 = vmatmul.mubr.bf16.gmra.mrb[0].mxu0 %v341
        %v471 = vpop.f32.mrb[0].mxu0
        %v472 = vadd.f32 %v302, %v471
        %v473 = vpop.f32.mrb[0].mxu0
        %v474 = vadd.f32 %v306, %v473
        %v475 = vpop.f32.mrb[0].mxu0
        %v476 = vadd.f32 %v302, %v475
        %v477 = vpop.f32.mrb[0].mxu0
        %v478 = vadd.f32 %v306, %v477
        %479 = vmatprep.mubr.bf16.mxu0 0
        %480 = vmatmul.mubr.bf16.gmra.mrb[0].mxu0 %v342
        %v481 = vpop.f32.mrb[0].mxu0
        %v482 = vadd.f32 %v302, %v481
        %v483 = vpop.f32.mrb[0].mxu0
        %v484 = vadd.f32 %v306, %v483
        %v485 = vpop.f32.mrb[0].mxu0
        %v486 = vadd.f32 %v302, %v485
        %v487 = vpop.f32.mrb[0].mxu0
        %v488 = vadd.f32 %v306, %v487
        %489 = vmatprep.mubr.bf16.mxu0 0
        %490 = vmatmul.mubr.bf16.gmra.mrb[0].mxu0 %v343
        %v491 = vpop.f32.mrb[0].mxu0
        %v492 = vadd.f32 %v302, %v491
        %v493 = vpop.f32.mrb[0].mxu0
        %v494 = vadd.f32 %v306, %v493
        %v495 = vpop.f32.mrb[0].mxu0
        %v496 = vadd.f32 %v302, %v495
        %v497 = vpop.f32.mrb[0].mxu0
        %v498 = vadd.f32 %v306, %v497
        %499 = vmatprep.mubr.bf16.mxu0 0
        %500 = vmatmul.mubr.bf16.gmra.mrb[0].mxu0 %v344
        %v501 = vpop.f32.mrb[0].mxu0
        %v502 = vadd.f32 %v302, %v501
        %v503 = vpop.f32.mrb[0].mxu0
        %v504 = vadd.f32 %v306, %v503
        %v505 = vpop.f32.mrb[0].mxu0
        %v506 = vadd.f32 %v302, %v505
        %v507 = vpop.f32.mrb[0].mxu0
        %v508 = vadd.f32 %v306, %v507
        %509 = vmatprep.mubr.bf16.mxu0 0
        %510 = vmatmul.mubr.bf16.gmra.mrb[0].mxu0 %v345
        %v511 = vpop.f32.mrb[0].mxu0
        %v512 = vadd.f32 %v302, %v511
        %v513 = vpop.f32.mrb[0].mxu0
        %v514 = vadd.f32 %v306, %v513
        %v515 = vpop.f32.mrb[0].mxu0
        %v516 = vadd.f32 %v302, %v515
        %v517 = vpop.f32.mrb[0].mxu0
        %v518 = vadd.f32 %v306, %v517
        %519 = vmatprep.mubr.bf16.mxu0 0
        %520 = vmatmul.mubr.bf16.gmra.mrb[0].mxu0 %v346
        %v521 = vpop.f32.mrb[0].mxu0
        %v522 = vadd.f32 %v302, %v521
        %v523 = vpop.f32.mrb[0].mxu0
        %v524 = vadd.f32 %v306, %v523
        %v525 = vpop.f32.mrb[0].mxu0
        %v526 = vadd.f32 %v302, %v525
        %v527 = vpop.f32.mrb[0].mxu0
        %v528 = vadd.f32 %v306, %v527
        %529 = vmatprep.mubr.bf16.mxu0 0
        %530 = vmatmul.mubr.bf16.gmra.mrb[0].mxu0 %v347
        %v531 = vpop.f32.mrb[0].mxu0
        %v532 = vadd.f32 %v302, %v531
        %v533 = vpop.f32.mrb[0].mxu0
        %v534 = vadd.f32 %v306, %v533
        %v535 = vpop.f32.mrb[0].mxu0
        %v536 = vadd.f32 %v302, %v535
        %v537 = vpop.f32.mrb[0].mxu0
        %v538 = vadd.f32 %v306, %v537
        %539 = vmatprep.mubr.bf16.mxu0 0
        %540 = vmatmul.mubr.bf16.gmra.mrb[0].mxu0 %v348
        %v541 = vpop.f32.mrb[0].mxu0
        %v542 = vadd.f32 %v302, %v541
        %v543 = vpop.f32.mrb[0].mxu0
        %v544 = vadd.f32 %v306, %v543
        %v545 = vpop.f32.mrb[0].mxu0
        %v546 = vadd.f32 %v302, %v545
        %v547 = vpop.f32.mrb[0].mxu0
        %v548 = vadd.f32 %v306, %v547
        %549 = vdwg.mxu0
        %550 = vxpose.xlu0.b32.start [1/16] %v472, 128
        %551 = vxpose.xlu0.b32.cont [2/16] %v476, 128
        %552 = vxpose.xlu0.b32.cont [3/16] %v482, 128
        %553 = vxpose.xlu0.b32.cont [4/16] %v486, 128
        %554 = vxpose.xlu0.b32.cont [5/16] %v492, 128
        %555 = vxpose.xlu0.b32.cont [6/16] %v496, 128
        %556 = vxpose.xlu0.b32.cont [7/16] %v502, 128
        %557 = vxpose.xlu0.b32.cont [8/16] %v506, 128
        %558 = vxpose.xlu0.b32.cont [9/16] %v512, 128
        %559 = vxpose.xlu0.b32.cont [10/16] %v516, 128
        %560 = vxpose.xlu0.b32.cont [11/16] %v522, 128
        %561 = vxpose.xlu0.b32.cont [12/16] %v526, 128
        %562 = vxpose.xlu0.b32.cont [13/16] %v532, 128
        %563 = vxpose.xlu0.b32.cont [14/16] %v536, 128
        %564 = vxpose.xlu0.b32.cont [15/16] %v542, 128
        %565 = vxpose.xlu0.b32.end [16/16] %v546, 128
        %v566 = vpop.trf.xlu0
        %v567 = vpop.trf.xlu0
        %v568 = vpop.trf.xlu0
        %v569 = vpop.trf.xlu0
        %v570 = vpop.trf.xlu0
        %v571 = vpop.trf.xlu0
        %v572 = vpop.trf.xlu0
        %v573 = vpop.trf.xlu0
        %v574 = vpop.trf.xlu0
        %v575 = vpop.trf.xlu0
        %v576 = vpop.trf.xlu0
        %v577 = vpop.trf.xlu0
        %v578 = vpop.trf.xlu0
        %v579 = vpop.trf.xlu0
        %v580 = vpop.trf.xlu0
        %v581 = vpop.trf.xlu0
        %v582 = vpack.c.bf16 %v567, %v566
        %v583 = vpack.c.bf16 %v569, %v568
        %v584 = vpack.c.bf16 %v571, %v570
        %v585 = vpack.c.bf16 %v573, %v572
        %v586 = vpack.c.bf16 %v575, %v574
        %v587 = vpack.c.bf16 %v577, %v576
        %v588 = vpack.c.bf16 %v579, %v578
        %v589 = vpack.c.bf16 %v581, %v580
        %v598 = vunpack.c.l.b16 %v582
        %v599 = vunpack.c.h.b16 %v582
        %v600 = vunpack.c.l.b16 %v583
        %v601 = vunpack.c.h.b16 %v583
        %v602 = vunpack.c.l.b16 %v584
        %v603 = vunpack.c.h.b16 %v584
        %v604 = vunpack.c.l.b16 %v585
        %v605 = vunpack.c.h.b16 %v585
        %v606 = vunpack.c.l.b16 %v586
        %v607 = vunpack.c.h.b16 %v586
        %v608 = vunpack.c.l.b16 %v587
        %v609 = vunpack.c.h.b16 %v587
        %v610 = vunpack.c.l.b16 %v588
        %v611 = vunpack.c.h.b16 %v588
        %v612 = vunpack.c.l.b16 %v589
        %v613 = vunpack.c.h.b16 %v589
        %v614 = vpack.c.b16 %v598, %v598
        %v615 = vpack.c.b16 %v599, %v599
        %v616 = vpack.c.b16 %v600, %v600
        %v617 = vpack.c.b16 %v601, %v601
        %v618 = vpack.c.b16 %v602, %v602
        %v619 = vpack.c.b16 %v603, %v603
        %v620 = vpack.c.b16 %v604, %v604
        %v621 = vpack.c.b16 %v605, %v605
        %v622 = vpack.c.b16 %v606, %v606
        %v623 = vpack.c.b16 %v607, %v607
        %v624 = vpack.c.b16 %v608, %v608
        %v625 = vpack.c.b16 %v609, %v609
        %v626 = vpack.c.b16 %v610, %v610
        %v627 = vpack.c.b16 %v611, %v611
        %v628 = vpack.c.b16 %v612, %v612
        %v629 = vpack.c.b16 %v613, %v613
        %646 = vst [vmem:[%s254] sm:$0xf] %v614
        %647 = vst [vmem:[%s254 + $0x4] sm:$0xf] %v615
        %648 = vst [vmem:[%s254 + $0x8] sm:$0xf] %v616
        %649 = vst [vmem:[%s254 + $0xc] sm:$0xf] %v617
        %650 = vst [vmem:[%s254 + $0x10] sm:$0xf] %v618
        %651 = vst [vmem:[%s254 + $0x14] sm:$0xf] %v619
        %652 = vst [vmem:[%s254 + $0x18] sm:$0xf] %v620
        %653 = vst [vmem:[%s254 + $0x1c] sm:$0xf] %v621
        %654 = vst [vmem:[%s254 + $0x20] sm:$0xf] %v622
        %655 = vst [vmem:[%s254 + $0x24] sm:$0xf] %v623
        %656 = vst [vmem:[%s254 + $0x28] sm:$0xf] %v624
        %657 = vst [vmem:[%s254 + $0x2c] sm:$0xf] %v625
        %658 = vst [vmem:[%s254 + $0x30] sm:$0xf] %v626
        %659 = vst [vmem:[%s254 + $0x34] sm:$0xf] %v627
        %660 = vst [vmem:[%s254 + $0x38] sm:$0xf] %v628
        %661 = vst [vmem:[%s254 + $0x3c] sm:$0xf] %v629
        %v662 = vpack.c.bf16 %v478, %v474
        %v663 = vpack.c.bf16 %v488, %v484
        %v664 = vpack.c.bf16 %v498, %v494
        %v665 = vpack.c.bf16 %v508, %v504
        %v666 = vpack.c.bf16 %v518, %v514
        %v667 = vpack.c.bf16 %v528, %v524
        %v668 = vpack.c.bf16 %v538, %v534
        %v669 = vpack.c.bf16 %v548, %v544
        %v678 = vunpack.c.l.b16 %v662
        %v679 = vunpack.c.h.b16 %v662
        %v680 = vunpack.c.l.b16 %v663
        %v681 = vunpack.c.h.b16 %v663
        %v682 = vunpack.c.l.b16 %v664
        %v683 = vunpack.c.h.b16 %v664
        %v684 = vunpack.c.l.b16 %v665
        %v685 = vunpack.c.h.b16 %v665
        %v686 = vunpack.c.l.b16 %v666
        %v687 = vunpack.c.h.b16 %v666
        %v688 = vunpack.c.l.b16 %v667
        %v689 = vunpack.c.h.b16 %v667
        %v690 = vunpack.c.l.b16 %v668
        %v691 = vunpack.c.h.b16 %v668
        %v692 = vunpack.c.l.b16 %v669
        %v693 = vunpack.c.h.b16 %v669
        %v694 = vpack.c.b16 %v678, %v678
        %v695 = vpack.c.b16 %v679, %v679
        %v696 = vpack.c.b16 %v680, %v680
        %v697 = vpack.c.b16 %v681, %v681
        %v698 = vpack.c.b16 %v682, %v682
        %v699 = vpack.c.b16 %v683, %v683
        %v700 = vpack.c.b16 %v684, %v684
        %v701 = vpack.c.b16 %v685, %v685
        %v702 = vpack.c.b16 %v686, %v686
        %v703 = vpack.c.b16 %v687, %v687
        %v704 = vpack.c.b16 %v688, %v688
        %v705 = vpack.c.b16 %v689, %v689
        %v706 = vpack.c.b16 %v690, %v690
        %v707 = vpack.c.b16 %v691, %v691
        %v708 = vpack.c.b16 %v692, %v692
        %v709 = vpack.c.b16 %v693, %v693
        %726 = vst [vmem:[%s261] sm:$0xf] %v694
        %727 = vst [vmem:[%s261 + $0x4] sm:$0xf] %v695
        %728 = vst [vmem:[%s261 + $0x8] sm:$0xf] %v696
        %729 = vst [vmem:[%s261 + $0xc] sm:$0xf] %v697
        %730 = vst [vmem:[%s261 + $0x10] sm:$0xf] %v698
        %731 = vst [vmem:[%s261 + $0x14] sm:$0xf] %v699
        %732 = vst [vmem:[%s261 + $0x18] sm:$0xf] %v700
        %733 = vst [vmem:[%s261 + $0x1c] sm:$0xf] %v701
        %734 = vst [vmem:[%s261 + $0x20] sm:$0xf] %v702
        %735 = vst [vmem:[%s261 + $0x24] sm:$0xf] %v703
        %736 = vst [vmem:[%s261 + $0x28] sm:$0xf] %v704
        %737 = vst [vmem:[%s261 + $0x2c] sm:$0xf] %v705
        %738 = vst [vmem:[%s261 + $0x30] sm:$0xf] %v706
        %739 = vst [vmem:[%s261 + $0x34] sm:$0xf] %v707
        %740 = vst [vmem:[%s261 + $0x38] sm:$0xf] %v708
        %741 = vst [vmem:[%s261 + $0x3c] sm:$0xf] %v709
        %s742 = sand.u32 %s118, 1
        %s743 = scalar_lea.sflag [#allocation4], %s742
        %s744 = sand.u32 %s118, 1
        %s745 = smul.addr %s744, 64
        %s746 = scalar_lea.vmem [#allocation7], %s745
        %s747 = sand.u32 %s146, 1
        %s748 = scalar_lea.sflag [#allocation9], %s747
        %s749 = sand.u32 %s146, 1
        %s750 = smul.addr %s749, 64
        %s751 = scalar_lea.vmem [#allocation8], %s750
        // Predicated region
        $region41: #{tpu_custom_call.1} parent=31 // pred_check
          %p752 = pneg %p128
        $region42: #{tpu_custom_call.1} parent=31 // pred_check_branch
          %754 = sbr.rel (%p752) target = $region44
        $region43: #{tpu_custom_call.1} parent=31 // pred_region
          %s756 = ssub.s32 1024, 1024
          %757 = vsyncadd %s743, %s756
          %s758 = smul.addr %s30, 32
          %s759 = sadd.s32 %s31, %s758
          %s760 = smul.addr %s759, 64
          %s761 = scalar_lea.hbm %s3, %s760
          %s762 = sshll.u32 %s746, 4
          %s763 = int_to_ptr.vmem [resolvable:$true] %s762
          %768 = dma.vmem_to_hbm [thread:$0]  %s763, 1024, %s761, %s743, 64, 128, 4
        $region44: #{tpu_custom_call.1} parent=31 // pred_fallthru
          _
        // Predicated region
        $region45: #{tpu_custom_call.1} parent=31 // pred_check
          %p769 = pneg %p156
        $region46: #{tpu_custom_call.1} parent=31 // pred_check_branch
          %771 = sbr.rel (%p769) target = $region48
        $region47: #{tpu_custom_call.1} parent=31 // pred_region
          %s772 = smul.u32 16, %s31
          %s774 = ssub.s32 1024, 1024
          %775 = vsyncadd %s748, %s774
          %s776 = smul.addr %s30, 32
          %s777 = sadd.s32 %s772, %s776
          %s778 = smul.addr %s777, 64
          %s779 = scalar_lea.hbm %s4, %s778
          %s780 = sshll.u32 %s751, 4
          %s781 = int_to_ptr.vmem [resolvable:$true] %s780
          %786 = dma.vmem_to_hbm [thread:$0]  %s781, 1024, %s779, %s748, 64, 64, 4
        $region48: #{tpu_custom_call.1} parent=31 // pred_fallthru
          _
      $region32: #{tpu_custom_call.1} parent=5 // pred_fallthru
        _
      %p787 = scmp.le.s32.totalorder 2, %s21
      // Predicated region
      $region49: #{tpu_custom_call.1} parent=5 // pred_check
        %p788 = pneg %p787
      $region50: #{tpu_custom_call.1} parent=5 // pred_check_branch
        %790 = sbr.rel (%p788) target = $region52
      $region51: #{tpu_custom_call.1} parent=5 // pred_region
        %s791 = ssub.s32 %s21, 2
        // Predicated region
        $region53: #{tpu_custom_call.1} parent=51 // pred_check
          %p792 = pneg %p134
        $region54: #{tpu_custom_call.1} parent=51 // pred_check_branch
          %794 = sbr.rel (%p792) target = $region56
        $region55: #{tpu_custom_call.1} parent=51 // pred_region
          %s795 = sand.u32 %s119, 1
          %s796 = scalar_lea.sflag [#allocation4], %s795
          %s797 = sand.u32 %s119, 1
          %s798 = smul.addr %s797, 64
          %s799 = scalar_lea.vmem [#allocation7], %s798
          %800 = dma.done %s796, 1024
        $region56: #{tpu_custom_call.1} parent=51 // pred_fallthru
          _
        // Predicated region
        $region57: #{tpu_custom_call.1} parent=51 // pred_check
          %p801 = pneg %p162
        $region58: #{tpu_custom_call.1} parent=51 // pred_check_branch
          %803 = sbr.rel (%p801) target = $region60
        $region59: #{tpu_custom_call.1} parent=51 // pred_region
          %s804 = sand.u32 %s147, 1
          %s805 = scalar_lea.sflag [#allocation9], %s804
          %s806 = sand.u32 %s147, 1
          %s807 = smul.addr %s806, 64
          %s808 = scalar_lea.vmem [#allocation8], %s807
          %809 = dma.done %s805, 1024
        $region60: #{tpu_custom_call.1} parent=51 // pred_fallthru
          _
      $region52: #{tpu_custom_call.1} parent=5 // pred_fallthru
        _
    $region6: #{tpu_custom_call.1} parent=1 // loop_footer
      %s25 = sadd.s32 1, %s21
    $region7: #{tpu_custom_call.1} parent=1 // loop_footer_branch
      %20 = sbr.rel target = $region3
    $region8: #{tpu_custom_call.1} parent=1 // loop_exit
      _
    %810 = vsyncpa [#allocation3], 1
    %s811 = scalar_lea.sflag [#allocation3], 1
    %812 = vsyncpa %s811, 1
    %813 = vsyncpa [#allocation6], 1
    %814 = vsyncpa [#allocation4], 1
    %s815 = scalar_lea.sflag [#allocation4], 1
    %816 = vsyncpa %s815, 1
    %817 = vsyncpa [#allocation9], 1
    %s818 = scalar_lea.sflag [#allocation9], 1
    %819 = vsyncpa %s818, 1

</llo_original>
